<compile_context>
chip_gen: v5e
topology: v5e:2x2
jax: 0.10.0
libtpu: 0.0.40
codegen_flags: <defaults>
</compile_context>

<pallas_src>
import functools

import jax
import jax.numpy as jnp
from jax.experimental import pallas as pl
from jax.experimental.pallas import tpu as pltpu

_LANES = 128
_MAX_BLOCK_ROWS = 4096   # (4096, 128) f32 = 2 MiB per input block


def _fscore_partials_kernel(pr_ref, gt_ref, tp_ref, sp_ref, sg_ref, *,
                            threshold, valid_rows, block_rows, needs_mask):
    i = pl.program_id(0)

    # Outputs are resident across the (reduction) grid axis -> init on step 0.
    @pl.when(i == 0)
    def _():
        tp_ref[...] = jnp.zeros_like(tp_ref)
        sp_ref[...] = jnp.zeros_like(sp_ref)
        sg_ref[...] = jnp.zeros_like(sg_ref)

    # Cast in-register after load (inputs may be bf16; accumulate in f32).
    gt = gt_ref[...].astype(jnp.float32)
    pr = pr_ref[...].astype(jnp.float32)

    if needs_mask:
        # Ragged last block: rows >= valid_rows are out-of-bounds garbage.
        # Zeroing gt alone is sufficient -- the ROI weighting (gt > 0) then
        # zeroes every other contribution (tp, fp) for free.
        row = i * block_rows + jax.lax.broadcasted_iota(jnp.int32, gt.shape, 0)
        gt = jnp.where(row < valid_rows, gt, 0.0)

    if threshold is None:
        # No binarization: pr stays continuous after the ROI weighting.
        pr_used = jnp.where(gt > 0.0, pr, 0.0)
        tp_v = gt * pr_used
        sp_v = pr_used
    else:
        # threshold >= 0:  where(gt>0, pr, 0) > thr  ==  (gt>0) & (pr>thr)
        ok = (gt > 0.0) & (pr > threshold)
        tp_v = jnp.where(ok, gt, 0.0)
        sp_v = ok.astype(jnp.float32)

    # Sublane-axis reduction only; cross-lane reduction is deferred to the
    # wrapper.  No scalar read-modify-write inside the hot loop.
    tp_ref[...] += jnp.sum(tp_v, axis=0, keepdims=True)
    sp_ref[...] += jnp.sum(sp_v, axis=0, keepdims=True)
    sg_ref[...] += jnp.sum(gt, axis=0, keepdims=True)


def fscore(y_pr, y_gt, *, beta=1.0, eps=1e-7, threshold=0.5, ignore_channels=None):
    """Pallas-backed Fscore.forward(y_pr, y_gt). Inputs are NCHW float arrays."""
    assert y_pr.shape == y_gt.shape
    if ignore_channels is not None:
        keep = [c for c in range(y_pr.shape[1]) if c not in ignore_channels]
        y_pr = y_pr[:, keep]
        y_gt = y_gt[:, keep]

    threshold = None if threshold is None else float(threshold)
    if threshold is not None and threshold < 0:
        # TODO(synk): threshold < 0 breaks the fused (gt>0)&(pr>thr) mask and the
        # inert-zero-padding argument; not supported by this kernel.
        raise NotImplementedError("threshold < 0 is not supported by this kernel")

    total = int(y_pr.size)
    pr_flat = y_pr.reshape(-1)   # free (metadata) reshape; no host-side astype
    gt_flat = y_gt.reshape(-1)

    tail = total % _LANES
    if tail:
        # Rare path (total not a multiple of 128): one full-array pad.  Zero
        # padding is inert for all three sums given threshold >= 0 or None.
        pad = _LANES - tail
        pr_flat = jnp.pad(pr_flat, (0, pad))
        gt_flat = jnp.pad(gt_flat, (0, pad))
    rows = pl.cdiv(total, _LANES)

    pr2 = pr_flat.reshape(rows, _LANES)
    gt2 = gt_flat.reshape(rows, _LANES)

    if rows <= _MAX_BLOCK_ROWS:
        # Full-extent block: exempt from the (8,128) divisibility rule, single
        # grid step, no row mask needed.
        block_rows = rows
        grid_n = 1
        needs_mask = False
    else:
        block_rows = _MAX_BLOCK_ROWS
        grid_n = pl.cdiv(rows, block_rows)
        needs_mask = (grid_n * block_rows) != rows

    kernel = functools.partial(
        _fscore_partials_kernel,
        threshold=threshold,
        valid_rows=rows,
        block_rows=block_rows,
        needs_mask=needs_mask,
    )

    tp_p, sp_p, sg_p = pl.pallas_call(
        kernel,
        out_shape=(
            jax.ShapeDtypeStruct((1, _LANES), jnp.float32),
            jax.ShapeDtypeStruct((1, _LANES), jnp.float32),
            jax.ShapeDtypeStruct((1, _LANES), jnp.float32),
        ),
        grid_spec=pltpu.PrefetchScalarGridSpec(
            num_scalar_prefetch=0,
            grid=(grid_n,),
            in_specs=[
                pl.BlockSpec((block_rows, _LANES), lambda i: (i, 0)),
                pl.BlockSpec((block_rows, _LANES), lambda i: (i, 0)),
            ],
            out_specs=[
                pl.BlockSpec((1, _LANES), lambda i: (0, 0)),
                pl.BlockSpec((1, _LANES), lambda i: (0, 0)),
                pl.BlockSpec((1, _LANES), lambda i: (0, 0)),
            ],
        ),
        compiler_params=pltpu.CompilerParams(dimension_semantics=("arbitrary",)),
    )(pr2, gt2)

    tp = jnp.sum(tp_p)
    fp = jnp.sum(sp_p) - tp
    fn = jnp.sum(sg_p) - tp
    b2 = beta ** 2
    score = ((1.0 + b2) * tp + eps) / ((1.0 + b2) * tp + b2 * fn + fp + eps)
    return score


def _fscore_ref(y_pr, y_gt, *, beta=1.0, eps=1e-7, threshold=0.5):
    """Pure-JAX reference mirroring the PyTorch forward, for sanity checking."""
    y_pr = y_pr.astype(jnp.float32)
    y_gt = y_gt.astype(jnp.float32)
    weight = jnp.where(y_gt > 0, 1.0, 0.0)
    pr = y_pr * weight
    if threshold is not None:
        pr = (pr > threshold).astype(jnp.float32)
    tp = jnp.sum(y_gt * pr)
    fp = jnp.sum(pr) - tp
    fn = jnp.sum(y_gt) - tp
    b2 = beta ** 2
    return ((1.0 + b2) * tp + eps) / ((1.0 + b2) * tp + b2 * fn + fp + eps)


if __name__ == "__main__":
    key = jax.random.PRNGKey(0)
    k1, k2, k3, k4, k5, k6 = jax.random.split(key, 6)

    # Main example: small NCHW, like the PyTorch module (no pad, no mask path).
    B, C, H, W = 2, 4, 16, 16
    y_pr = jax.random.uniform(k1, (B, C, H, W), dtype=jnp.float32)           # "probabilities"
    y_gt = (jax.random.uniform(k2, (B, C, H, W)) > 0.5).astype(jnp.float32)  # binary mask

    score = jax.block_until_ready(fscore(y_pr, y_gt, beta=1.0, eps=1e-7, threshold=0.5))
    ref = _fscore_ref(y_pr, y_gt, beta=1.0, eps=1e-7, threshold=0.5)
    assert jnp.allclose(score, ref, rtol=1e-5, atol=1e-6), (score, ref)

    # threshold=None path on the same data.
    score_n = jax.block_until_ready(fscore(y_pr, y_gt, threshold=None))
    ref_n = _fscore_ref(y_pr, y_gt, threshold=None)
    assert jnp.allclose(score_n, ref_n, rtol=1e-5, atol=1e-6), (score_n, ref_n)

    # Odd total (exercises the pad path and the full-extent non-multiple-of-8 block).
    y_pr_o = jax.random.uniform(k3, (2, 3, 7, 9), dtype=jnp.float32)
    y_gt_o = (jax.random.uniform(k4, (2, 3, 7, 9)) > 0.5).astype(jnp.float32)
    score_o = jax.block_until_ready(fscore(y_pr_o, y_gt_o, threshold=0.5))
    ref_o = _fscore_ref(y_pr_o, y_gt_o, threshold=0.5)
    assert jnp.allclose(score_o, ref_o, rtol=1e-5, atol=1e-6), (score_o, ref_o)

    # Moderate size exercising the multi-step grid + ragged last block mask path.
    y_pr_b = jax.random.uniform(k5, (1, 1, 4100, 128), dtype=jnp.float32)
    y_gt_b = (jax.random.uniform(k6, (1, 1, 4100, 128)) > 0.5).astype(jnp.float32)
    score_b = jax.block_until_ready(fscore(y_pr_b, y_gt_b, threshold=0.5))
    ref_b = _fscore_ref(y_pr_b, y_gt_b, threshold=0.5)
    assert jnp.allclose(score_b, ref_b, rtol=1e-4, atol=1e-6), (score_b, ref_b)

    print("KERNEL_OK")
</pallas_src>

<mosaic_0001>
module attributes {stable_mosaic.version = 11 : i64} {
  func.func @_fscore_partials_kernel(%arg0: i32, %arg1: memref<16x128xf32, #tpu.memory_space<vmem>>, %arg2: memref<16x128xf32, #tpu.memory_space<vmem>>, %arg3: memref<1x128xf32, #tpu.memory_space<vmem>>, %arg4: memref<1x128xf32, #tpu.memory_space<vmem>>, %arg5: memref<1x128xf32, #tpu.memory_space<vmem>>) attributes {dimension_semantics = [#tpu.dimension_semantics<arbitrary>], iteration_bounds = array<i64: 1>, scalar_prefetch = 0 : i64, scratch_operands = 0 : i64, tpu.core_type = #tpu.core_type<tc>, window_params = [{transform_indices = @transform_0, window_bounds = array<i64: 16, 128>}, {transform_indices = @transform_1, window_bounds = array<i64: 16, 128>}, {pipeline_mode = #tpu.pipeline_mode<synchronous>, transform_indices = @transform_2, window_bounds = array<i64: 1, 128>}, {pipeline_mode = #tpu.pipeline_mode<synchronous>, transform_indices = @transform_3, window_bounds = array<i64: 1, 128>}, {pipeline_mode = #tpu.pipeline_mode<synchronous>, transform_indices = @transform_4, window_bounds = array<i64: 1, 128>}]} {
    %c0_i32 = arith.constant 0 : i32
    %0 = arith.cmpi eq, %arg0, %c0_i32 : i32
    %1 = arith.extui %0 : i1 to i32
    %c0_i32_0 = arith.constant 0 : i32
    %2 = arith.cmpi ne, %1, %c0_i32_0 : i32
    scf.if %2 {
      %cst_21 = arith.constant 0.000000e+00 : f32
      %29 = vector.broadcast %cst_21 : f32 to vector<1x128xf32>
      %c0_22 = arith.constant 0 : index
      %c0_23 = arith.constant 0 : index
      %30 = vector.load %arg3[%c0_22, %c0_23] : memref<1x128xf32, #tpu.memory_space<vmem>>, vector<1x128xf32>
      tpu.vector_store %arg3[%c0_22, %c0_23], %29 {strides = array<i32>} : memref<1x128xf32, #tpu.memory_space<vmem>>, vector<1x128xf32>,
      %cst_24 = arith.constant 0.000000e+00 : f32
      %31 = vector.broadcast %cst_24 : f32 to vector<1x128xf32>
      %c0_25 = arith.constant 0 : index
      %c0_26 = arith.constant 0 : index
      %32 = vector.load %arg4[%c0_25, %c0_26] : memref<1x128xf32, #tpu.memory_space<vmem>>, vector<1x128xf32>
      tpu.vector_store %arg4[%c0_25, %c0_26], %31 {strides = array<i32>} : memref<1x128xf32, #tpu.memory_space<vmem>>, vector<1x128xf32>,
      %cst_27 = arith.constant 0.000000e+00 : f32
      %33 = vector.broadcast %cst_27 : f32 to vector<1x128xf32>
      %c0_28 = arith.constant 0 : index
      %c0_29 = arith.constant 0 : index
      %34 = vector.load %arg5[%c0_28, %c0_29] : memref<1x128xf32, #tpu.memory_space<vmem>>, vector<1x128xf32>
      tpu.vector_store %arg5[%c0_28, %c0_29], %33 {strides = array<i32>} : memref<1x128xf32, #tpu.memory_space<vmem>>, vector<1x128xf32>,
    } else {
    }
    %c0 = arith.constant 0 : index
    %c0_1 = arith.constant 0 : index
    %3 = vector.load %arg2[%c0, %c0_1] : memref<16x128xf32, #tpu.memory_space<vmem>>, vector<16x128xf32>
    %c0_2 = arith.constant 0 : index
    %c0_3 = arith.constant 0 : index
    %4 = vector.load %arg1[%c0_2, %c0_3] : memref<16x128xf32, #tpu.memory_space<vmem>>, vector<16x128xf32>
    %cst = arith.constant 0.000000e+00 : f32
    %5 = vector.broadcast %cst : f32 to vector<16x128xf32>
    %6 = arith.cmpf ogt, %3, %5 : vector<16x128xf32>
    %cst_4 = arith.constant 5.000000e-01 : f32
    %7 = vector.broadcast %cst_4 : f32 to vector<16x128xf32>
    %8 = arith.cmpf ogt, %4, %7 : vector<16x128xf32>
    %9 = arith.andi %6, %8 : vector<16x128xi1>
    %cst_5 = arith.constant 0.000000e+00 : f32
    %10 = vector.broadcast %cst_5 : f32 to vector<16x128xf32>
    %11 = arith.select %9, %3, %10 : vector<16x128xi1>, vector<16x128xf32>
    %12 = arith.extui %9 : vector<16x128xi1> to vector<16x128xi32>
    %13 = arith.sitofp %12 : vector<16x128xi32> to vector<16x128xf32>
    %c0_6 = arith.constant 0 : index
    %c0_7 = arith.constant 0 : index
    %14 = vector.load %arg3[%c0_6, %c0_7] : memref<1x128xf32, #tpu.memory_space<vmem>>, vector<1x128xf32>
    %cst_8 = arith.constant dense<0.000000e+00> : vector<128xf32>
    %15 = vector.multi_reduction <add>, %11, %cst_8 [0] : vector<16x128xf32> to vector<128xf32>
    %16 = vector.shape_cast %15 : vector<128xf32> to vector<1x128xf32>
    %17 = arith.addf %14, %16 : vector<1x128xf32>
    %c0_9 = arith.constant 0 : index
    %c0_10 = arith.constant 0 : index
    %18 = vector.load %arg3[%c0_9, %c0_10] : memref<1x128xf32, #tpu.memory_space<vmem>>, vector<1x128xf32>
    tpu.vector_store %arg3[%c0_9, %c0_10], %17 {strides = array<i32>} : memref<1x128xf32, #tpu.memory_space<vmem>>, vector<1x128xf32>,
    %c0_11 = arith.constant 0 : index
    %c0_12 = arith.constant 0 : index
    %19 = vector.load %arg4[%c0_11, %c0_12] : memref<1x128xf32, #tpu.memory_space<vmem>>, vector<1x128xf32>
    %cst_13 = arith.constant dense<0.000000e+00> : vector<128xf32>
    %20 = vector.multi_reduction <add>, %13, %cst_13 [0] : vector<16x128xf32> to vector<128xf32>
    %21 = vector.shape_cast %20 : vector<128xf32> to vector<1x128xf32>
    %22 = arith.addf %19, %21 : vector<1x128xf32>
    %c0_14 = arith.constant 0 : index
    %c0_15 = arith.constant 0 : index
    %23 = vector.load %arg4[%c0_14, %c0_15] : memref<1x128xf32, #tpu.memory_space<vmem>>, vector<1x128xf32>
    tpu.vector_store %arg4[%c0_14, %c0_15], %22 {strides = array<i32>} : memref<1x128xf32, #tpu.memory_space<vmem>>, vector<1x128xf32>,
    %c0_16 = arith.constant 0 : index
    %c0_17 = arith.constant 0 : index
    %24 = vector.load %arg5[%c0_16, %c0_17] : memref<1x128xf32, #tpu.memory_space<vmem>>, vector<1x128xf32>
    %cst_18 = arith.constant dense<0.000000e+00> : vector<128xf32>
    %25 = vector.multi_reduction <add>, %3, %cst_18 [0] : vector<16x128xf32> to vector<128xf32>
    %26 = vector.shape_cast %25 : vector<128xf32> to vector<1x128xf32>
    %27 = arith.addf %24, %26 : vector<1x128xf32>
    %c0_19 = arith.constant 0 : index
    %c0_20 = arith.constant 0 : index
    %28 = vector.load %arg5[%c0_19, %c0_20] : memref<1x128xf32, #tpu.memory_space<vmem>>, vector<1x128xf32>
    tpu.vector_store %arg5[%c0_19, %c0_20], %27 {strides = array<i32>} : memref<1x128xf32, #tpu.memory_space<vmem>>, vector<1x128xf32>,
    return
  }
  func.func @transform_0(%arg0: i32) -> (i32, i32) {
    %c0_i32 = arith.constant 0 : i32
    %c0_i32_0 = arith.constant 0 : i32
    return %arg0, %c0_i32 : i32, i32
  }
  func.func @transform_1(%arg0: i32) -> (i32, i32) {
    %c0_i32 = arith.constant 0 : i32
    %c0_i32_0 = arith.constant 0 : i32
    return %arg0, %c0_i32 : i32, i32
  }
  func.func @transform_2(%arg0: i32) -> (i32, i32) {
    %c0_i32 = arith.constant 0 : i32
    %c0_i32_0 = arith.constant 0 : i32
    %c0_i32_1 = arith.constant 0 : i32
    return %c0_i32, %c0_i32_0 : i32, i32
  }
  func.func @transform_3(%arg0: i32) -> (i32, i32) {
    %c0_i32 = arith.constant 0 : i32
    %c0_i32_0 = arith.constant 0 : i32
    %c0_i32_1 = arith.constant 0 : i32
    return %c0_i32, %c0_i32_0 : i32, i32
  }
  func.func @transform_4(%arg0: i32) -> (i32, i32) {
    %c0_i32 = arith.constant 0 : i32
    %c0_i32_0 = arith.constant 0 : i32
    %c0_i32_1 = arith.constant 0 : i32
    return %c0_i32, %c0_i32_0 : i32, i32
  }
}

</mosaic_0001>

<llo_original>
// kernel: tpu_custom_call.1
$region0: #{tpu_custom_call.1}
  #allocation0 [shape = 'u32[]', space=smem, size = 0x4, offset = 0x4, fixed_abs, tag = 'smem constant byte address 0x4 - core index']
  #allocation1 [shape = 'u32[72,128]{1,0:T(1,128)}', space=vmem, size = 0x9000, scoped, tag = 'internal scratch']
  %s0 = inlined_call_operand.hbm [shape: f32[16,128], index: 0, kind: input, shape index: {}]
  %s1 = inlined_call_operand.hbm [shape: f32[16,128], index: 1, kind: input, shape index: {}]
  %s2 = inlined_call_operand.hbm [shape: f32[1,128], index: 2, kind: output, shape index: {0}]
  %s3 = inlined_call_operand.hbm [shape: f32[1,128], index: 3, kind: output, shape index: {1}]
  %s4 = inlined_call_operand.hbm [shape: f32[1,128], index: 4, kind: output, shape index: {2}]
  %5 = xla_tuple %s2, %s3, %s4
  %s6 = sld [smem:[#allocation0]]
  $region46: #{tpu_custom_call.1} parent=0
    _
  %s8 = ssub.s32 1, %s6
  %s9 = scalar_select 0, %s8, %s6
  $region1: #{tpu_custom_call.1} parent=0
    #allocation2 [shape = 'u8[8192]{0}', space=vmem, size = 0x2000, scoped, tag = 'input window, operand 0, single buffered']
    #allocation3 [shape = 's32[1]{0}', space=sflag, size = 0x4, scoped, tag = 'scoped memory for tpu_custom_call.1']
    #allocation4 [shape = 's32[1]{0}', space=sflag, size = 0x4, scoped, tag = 'scoped memory for tpu_custom_call.1']
    #allocation5 [shape = 'u8[8192]{0}', space=vmem, size = 0x2000, scoped, tag = 'input window, operand 1, single buffered']
    #allocation6 [shape = 's32[1]{0}', space=sflag, size = 0x4, scoped, tag = 'scoped memory for tpu_custom_call.1']
    #allocation7 [shape = 'u8[512]{0}', space=vmem, size = 0x400, scoped, tag = 'output window, operand 0, single buffered']
    #allocation8 [shape = 'u8[512]{0}', space=vmem, size = 0x400, scoped, tag = 'output window, operand 1, single buffered']
    #allocation9 [shape = 's32[1]{0}', space=sflag, size = 0x4, scoped, tag = 'scoped memory for tpu_custom_call.1']
    #allocation10 [shape = 'u8[512]{0}', space=vmem, size = 0x400, scoped, tag = 'output window, operand 2, single buffered']
    %10 = vsyncpa [#allocation3], 0
    %11 = vsyncpa [#allocation6], 0
    %12 = vsyncpa [#allocation4], 0
    %13 = vsyncpa [#allocation9], 0
    // Predicated region
    $region2: #{tpu_custom_call.1} parent=1 // pred_check
      _
    $region3: #{tpu_custom_call.1} parent=1 // pred_check_branch
      %15 = sbr.rel (0) target = $region5
    $region4: #{tpu_custom_call.1} parent=1 // pred_region
      %17 = vsyncadd [#allocation3], 0
      %s18 = sshll.u32 %s0, 4
      %s19 = int_to_ptr.hbm [resolvable:$true] %s18
      %s20 = sshll.u32 [#allocation2], 4
      %s21 = int_to_ptr.vmem [resolvable:$true] %s20
      %26 = dma.hbm_to_vmem [thread:$0]  %s19, 256, %s21, [#allocation3], 128, 128, 8
    $region5: #{tpu_custom_call.1} parent=1 // pred_fallthru
      _
    // Predicated region
    $region6: #{tpu_custom_call.1} parent=1 // pred_check
      _
    $region7: #{tpu_custom_call.1} parent=1 // pred_check_branch
      %28 = sbr.rel (0) target = $region9
    $region8: #{tpu_custom_call.1} parent=1 // pred_region
      %30 = vsyncadd [#allocation6], 0
      %s31 = sshll.u32 %s1, 4
      %s32 = int_to_ptr.hbm [resolvable:$true] %s31
      %s33 = sshll.u32 [#allocation5], 4
      %s34 = int_to_ptr.vmem [resolvable:$true] %s33
      %39 = dma.hbm_to_vmem [thread:$0]  %s32, 256, %s34, [#allocation6], 128, 128, 8
    $region9: #{tpu_custom_call.1} parent=1 // pred_fallthru
      _
    // Predicated region
    $region10: #{tpu_custom_call.1} parent=1 // pred_check
      _
    $region11: #{tpu_custom_call.1} parent=1 // pred_check_branch
      %41 = sbr.rel (0) target = $region13
    $region12: #{tpu_custom_call.1} parent=1 // pred_region
      %43 = dma.done [#allocation3], 256
    $region13: #{tpu_custom_call.1} parent=1 // pred_fallthru
      _
    // Predicated region
    $region14: #{tpu_custom_call.1} parent=1 // pred_check
      _
    $region15: #{tpu_custom_call.1} parent=1 // pred_check_branch
      %45 = sbr.rel (0) target = $region17
    $region16: #{tpu_custom_call.1} parent=1 // pred_region
      %47 = dma.done [#allocation6], 256
    $region17: #{tpu_custom_call.1} parent=1 // pred_fallthru
      _
    %p48 = scmp.eq.s32.totalorder 0, 0
    // Predicated region
    $region18: #{tpu_custom_call.1} parent=1 // pred_check
      %p49 = pneg %p48
    $region19: #{tpu_custom_call.1} parent=1 // pred_check_branch
      %51 = sbr.rel (%p49) target = $region21
    $region20: #{tpu_custom_call.1} parent=1 // pred_region
      %52 = vst [vmem:[#allocation7] sm:$0x1] 0.0
      %53 = vst [vmem:[#allocation8] sm:$0x1] 0.0
      %54 = vst [vmem:[#allocation10] sm:$0x1] 0.0
    $region21: #{tpu_custom_call.1} parent=1 // pred_fallthru
      _
    %v55 = vld [vmem:[#allocation5] sm:$0xff]
    %v56 = vld [vmem:[#allocation5 + $0x8] sm:$0xff]
    %v57 = vld [vmem:[#allocation2] sm:$0xff]
    %v58 = vld [vmem:[#allocation2 + $0x8] sm:$0xff]
    %vm59 = vcmp.gt.f32.partialorder %v55, 0.0
    %vm60 = vcmp.gt.f32.partialorder %v56, 0.0
    %vm61 = vcmp.gt.f32.partialorder %v57, 0.5
    %vm62 = vcmp.gt.f32.partialorder %v58, 0.5
    %vm63 = vmand %vm59, %vm61
    %vm64 = vmand %vm60, %vm62
    %v65 = vsel %vm63, %v55, 0.0
    %v66 = vsel %vm64, %v56, 0.0
    %v67 = vsel %vm63, 1, 0
    %v68 = vsel %vm64, 1, 0
    %v69 = vcvt.s32.f32 %v67
    %v70 = vcvt.s32.f32 %v68
    %v71 = vld [vmem:[#allocation7] sm:$0x1]
    %v72 = vadd.f32 %v65, %v66
    %v73 = vrot.slane %v72, 4
    %v74 = vadd.f32 %v72, %v73
    %v75 = vrot.slane %v74, 2
    %v76 = vadd.f32 %v74, %v75
    %v77 = vrot.slane %v76, 1
    %v78 = vadd.f32 %v76, %v77
    %v79 = vadd.f32 %v71, %v78
    %80 = vst [vmem:[#allocation7] sm:$0x1] %v79
    %v81 = vld [vmem:[#allocation8] sm:$0x1]
    %v82 = vadd.f32 %v69, %v70
    %v83 = vrot.slane %v82, 4
    %v84 = vadd.f32 %v82, %v83
    %v85 = vrot.slane %v84, 2
    %v86 = vadd.f32 %v84, %v85
    %v87 = vrot.slane %v86, 1
    %v88 = vadd.f32 %v86, %v87
    %v89 = vadd.f32 %v81, %v88
    %90 = vst [vmem:[#allocation8] sm:$0x1] %v89
    %v91 = vld [vmem:[#allocation10] sm:$0x1]
    %v92 = vadd.f32 %v55, %v56
    %v93 = vrot.slane %v92, 4
    %v94 = vadd.f32 %v92, %v93
    %v95 = vrot.slane %v94, 2
    %v96 = vadd.f32 %v94, %v95
    %v97 = vrot.slane %v96, 1
    %v98 = vadd.f32 %v96, %v97
    %v99 = vadd.f32 %v91, %v98
    %100 = vst [vmem:[#allocation10] sm:$0x1] %v99
    // Predicated region
    $region22: #{tpu_custom_call.1} parent=1 // pred_check
      _
    $region23: #{tpu_custom_call.1} parent=1 // pred_check_branch
      %102 = sbr.rel (0) target = $region25
    $region24: #{tpu_custom_call.1} parent=1 // pred_region
      %104 = vsyncadd [#allocation4], 0
      %s106 = sshll.u32 [#allocation7], 4
      %s107 = int_to_ptr.vmem [resolvable:$true] %s106
      %s108 = sshll.u32 %s2, 4
      %s109 = int_to_ptr.hbm [resolvable:$true] %s108
      %111 = dma.vmem_to_hbm [thread:$0]  %s107, 16, %s109, [#allocation4]
    $region25: #{tpu_custom_call.1} parent=1 // pred_fallthru
      _
    // Predicated region
    $region26: #{tpu_custom_call.1} parent=1 // pred_check
      _
    $region27: #{tpu_custom_call.1} parent=1 // pred_check_branch
      %113 = sbr.rel (0) target = $region29
    $region28: #{tpu_custom_call.1} parent=1 // pred_region
      %115 = vsyncadd [#allocation9], 0
      %s117 = sshll.u32 [#allocation8], 4
      %s118 = int_to_ptr.vmem [resolvable:$true] %s117
      %s119 = sshll.u32 %s3, 4
      %s120 = int_to_ptr.hbm [resolvable:$true] %s119
      %122 = dma.vmem_to_hbm [thread:$0]  %s118, 16, %s120, [#allocation9]
    $region29: #{tpu_custom_call.1} parent=1 // pred_fallthru
      _
    // Predicated region
    $region30: #{tpu_custom_call.1} parent=1 // pred_check
      _
    $region31: #{tpu_custom_call.1} parent=1 // pred_check_branch
      %124 = sbr.rel (0) target = $region33
    $region32: #{tpu_custom_call.1} parent=1 // pred_region
      %126 = vsyncadd [#allocation9], 0
      %s128 = sshll.u32 [#allocation10], 4
      %s129 = int_to_ptr.vmem [resolvable:$true] %s128
      %s130 = sshll.u32 %s4, 4
      %s131 = int_to_ptr.hbm [resolvable:$true] %s130
      %133 = dma.vmem_to_hbm [thread:$0]  %s129, 16, %s131, [#allocation9]
    $region33: #{tpu_custom_call.1} parent=1 // pred_fallthru
      _
    // Predicated region
    $region34: #{tpu_custom_call.1} parent=1 // pred_check
      _
    $region35: #{tpu_custom_call.1} parent=1 // pred_check_branch
      %135 = sbr.rel (0) target = $region37
    $region36: #{tpu_custom_call.1} parent=1 // pred_region
      %137 = dma.done [#allocation4], 16
    $region37: #{tpu_custom_call.1} parent=1 // pred_fallthru
      _
    // Predicated region
    $region38: #{tpu_custom_call.1} parent=1 // pred_check
      _
    $region39: #{tpu_custom_call.1} parent=1 // pred_check_branch
      %139 = sbr.rel (0) target = $region41
    $region40: #{tpu_custom_call.1} parent=1 // pred_region
      %141 = dma.done [#allocation9], 16
    $region41: #{tpu_custom_call.1} parent=1 // pred_fallthru
      _
    // Predicated region
    $region42: #{tpu_custom_call.1} parent=1 // pred_check
      _
    $region43: #{tpu_custom_call.1} parent=1 // pred_check_branch
      %143 = sbr.rel (0) target = $region45
    $region44: #{tpu_custom_call.1} parent=1 // pred_region
      %145 = dma.done [#allocation9], 16
    $region45: #{tpu_custom_call.1} parent=1 // pred_fallthru
      _
    %146 = vsyncpa [#allocation3], 1
    %147 = vsyncpa [#allocation6], 1
    %148 = vsyncpa [#allocation4], 1
    %149 = vsyncpa [#allocation9], 1

</llo_original>
